<compile_context>
chip_gen: v5e
topology: v5e:2x2
jax: 0.10.0
libtpu: 0.0.40
codegen_flags: <defaults>
</compile_context>

<pallas_src>
import functools

import jax
import jax.numpy as jnp
from jax.experimental import pallas as pl
from jax.experimental.pallas import tpu as pltpu

# Tap order used everywhere: (dh, dw), row-major over the 3x3 window.
_TAPS = [(dh, dw) for dh in (-1, 0, 1) for dw in (-1, 0, 1)]
_OFF_TAPS = [t for t in _TAPS if t != (0, 0)]


def _round_up(x, m):
    return ((x + m - 1) // m) * m


def _resblock_kernel(x_ref, w1_ref, w2_ref, mask_ref, o_ref, *, W, group_by_dh):
    """One batch element, channels-first flat layout (lane dim = padded H*W).

    x_ref   : (1, Cin+1, HWp) f32  input + trailing all-ones channel (conv1 bias)
    w1_ref  : (Csq_p, Cin+1) bf16  folded 1x1 conv; row Csq is the bias carrier
                                   (yields a constant-1 hidden row after LeakyReLU)
    w2_ref  : (Cout, 9*Csq_p) bf16 folded 3x3 conv, tap-major columns in _TAPS
                                   order; centre-tap column Csq carries conv2 bias
    mask_ref: (8, HWp) f32         0/1 border-validity row per off-centre tap
    o_ref   : (1, Cout, HWp)       output
    """
    csq_p = w1_ref.shape[0]
    cout = o_ref.shape[1]

    # ---- conv1 (1x1) + folded BN + folded bias + LeakyReLU(0.1): bf16 matmul ----
    x_bf = x_ref[0].astype(jnp.bfloat16)                          # (Cin+1, HWp)
    y1 = jnp.dot(w1_ref[...], x_bf, preferred_element_type=jnp.float32)
    y1 = jnp.maximum(y1, 0.1 * y1)                                # (Csq_p, HWp) f32
    hw_p = y1.shape[-1]

    # ---- conv2 (3x3, stride 1, pad 1) via rolled im2col taps ----
    # tap(dh,dw)[:, p] = y1[:, p + dh*W + dw], zeroed where (h+dh, w+dw) falls
    # outside the image.  pltpu.roll keeps the data in vregs (XLU slot only);
    # the wrapped / HW-padding lanes are exactly the ones the mask zeroes out.
    def make_tap(dh, dw):
        if dh == 0 and dw == 0:
            return y1.astype(jnp.bfloat16)                        # centre: reuse vregs
        shift = (-(dh * W + dw)) % hw_p
        rolled = pltpu.roll(y1, shift=shift, axis=1)
        idx = _OFF_TAPS.index((dh, dw))
        m = mask_ref[idx:idx + 1, :]                              # (1, HWp) bcast
        return (rolled * m).astype(jnp.bfloat16)

    if group_by_dh:
        # 3 accumulating matmuls (K = 3*Csq_p): patches footprint 3x smaller.
        # For production Csq_p (>=128) the w2 column slices are lane-aligned.
        y2 = None
        for g, dh in enumerate((-1, 0, 1)):
            patches = jnp.concatenate([make_tap(dh, dw) for dw in (-1, 0, 1)],
                                      axis=0)                     # (3*Csq_p, HWp)
            w2_g = w2_ref[:, g * 3 * csq_p:(g + 1) * 3 * csq_p]
            part = jnp.dot(w2_g, patches, preferred_element_type=jnp.float32)
            y2 = part if y2 is None else y2 + part
    else:
        # Fused-K matmul over all 9 taps (small Csq path).
        patches = jnp.concatenate([make_tap(dh, dw) for dh, dw in _TAPS], axis=0)
        y2 = jnp.dot(w2_ref[...], patches, preferred_element_type=jnp.float32)

    y2 = jnp.maximum(y2, 0.1 * y2)                                # (Cout, HWp)

    # ---- residual add: re-read x here (not held live across the matmuls) ----
    o_ref[0] = (x_ref[0, :cout, :] + y2).astype(o_ref.dtype)


def resblock_pallas(x_nchw, w1_mat, w2_mat, group_taps_by_dh=None):
    N, Cin, H, W = x_nchw.shape
    Cout, k2 = w2_mat.shape
    Csq_p = k2 // 9
    assert Cout == Cin, "ResBlock residual requires inplanes == planes"
    assert w1_mat.shape == (Csq_p, Cin + 1)

    HW = H * W
    HW_p = _round_up(HW, 128)
    if group_taps_by_dh is None:
        # Fused-K patches only while the 9x bf16 copy is comfortably small.
        group_taps_by_dh = Csq_p >= 128

    # Channels-first flat layout; pad the lane dim to a multiple of 128 and
    # append the all-ones bias channel (cheap one-time XLA ops, no transposes).
    x_flat = x_nchw.reshape(N, Cin, HW).astype(jnp.float32)
    x_flat = jnp.pad(x_flat, ((0, 0), (0, 0), (0, HW_p - HW)))
    x_aug = jnp.concatenate(
        [x_flat, jnp.ones((N, 1, HW_p), jnp.float32)], axis=1)   # (N, Cin+1, HWp)

    # Precomputed 0/1 border-validity rows for the 8 off-centre taps.
    # Padding lanes get 0, so they never leak into real output lanes.
    h_idx = jnp.arange(HW, dtype=jnp.int32) // W
    w_idx = jnp.arange(HW, dtype=jnp.int32) % W
    rows = []
    for dh, dw in _OFF_TAPS:
        ok = ((h_idx + dh >= 0) & (h_idx + dh < H) &
              (w_idx + dw >= 0) & (w_idx + dw < W))
        rows.append(ok)
    masks = jnp.stack(rows).astype(jnp.float32)                   # (8, HW)
    masks = jnp.pad(masks, ((0, 0), (0, HW_p - HW)))

    kernel = pl.pallas_call(
        functools.partial(_resblock_kernel, W=W,
                          group_by_dh=bool(group_taps_by_dh)),
        out_shape=jax.ShapeDtypeStruct((N, Cout, HW_p), jnp.float32),
        grid=(N,),
        in_specs=[
            pl.BlockSpec((1, Cin + 1, HW_p), lambda n: (n, 0, 0)),
            pl.BlockSpec((Csq_p, Cin + 1), lambda n: (0, 0)),
            pl.BlockSpec((Cout, 9 * Csq_p), lambda n: (0, 0)),
            pl.BlockSpec((8, HW_p), lambda n: (0, 0)),
        ],
        out_specs=pl.BlockSpec((1, Cout, HW_p), lambda n: (n, 0, 0)),
        compiler_params=pltpu.CompilerParams(
            # Batch elements are independent -> shard across TensorCores.
            dimension_semantics=("parallel",)),
    )
    out = kernel(x_aug, w1_mat, w2_mat, masks)
    out = out[:, :, :HW].reshape(N, Cout, H, W)
    return out.astype(x_nchw.dtype)


def fold_bn_oihw(w_oihw, gamma, beta, mean, var, eps=1e-5):
    """Fold eval-mode BatchNorm2d into an OIHW conv weight + per-channel bias."""
    scale = gamma / jnp.sqrt(var + eps)                           # (Cout,)
    w = w_oihw * scale[:, None, None, None]
    b = beta - mean * scale
    return w.astype(jnp.float32), b.astype(jnp.float32)


def prepare_resblock_params(conv1_w, bn1, conv2_w, bn2, eps=1e-5):
    """Fold eval-mode BN + both biases into two bf16 matmul weights.

    Returns
      w1_mat: (Csq_p, Cin+1) bf16  [folded 1x1 weight | folded bias]; row Csq
              maps the wrapper's ones channel to a constant-1 hidden row.
      w2_mat: (Cout, 9*Csq_p) bf16 tap-major (dh, dw) column blocks of the
              folded 3x3 weight; centre-tap column Csq holds the conv2 bias.
    Csq_p = round_up(Csq+1, 16) keeps the bf16 tap concat packed-tile aligned.
    """
    Csq, Cin = conv1_w.shape[0], conv1_w.shape[1]
    Cout = conv2_w.shape[0]
    Csq_p = _round_up(Csq + 1, 16)

    w1f, b1f = fold_bn_oihw(conv1_w, *bn1, eps=eps)               # (Csq,Cin,1,1), (Csq,)
    w2f, b2f = fold_bn_oihw(conv2_w, *bn2, eps=eps)               # (Cout,Csq,3,3), (Cout,)

    w1_mat = jnp.zeros((Csq_p, Cin + 1), jnp.float32)
    w1_mat = w1_mat.at[:Csq, :Cin].set(w1f.reshape(Csq, Cin))
    w1_mat = w1_mat.at[:Csq, Cin].set(b1f)
    w1_mat = w1_mat.at[Csq, Cin].set(1.0)                         # bias-carrier row

    w2_blocks = jnp.zeros((Cout, 9, Csq_p), jnp.float32)
    for t, (dh, dw) in enumerate(_TAPS):
        w2_blocks = w2_blocks.at[:, t, :Csq].set(w2f[:, :, dh + 1, dw + 1])
    w2_blocks = w2_blocks.at[:, _TAPS.index((0, 0)), Csq].set(b2f)
    w2_mat = w2_blocks.reshape(Cout, 9 * Csq_p)

    return w1_mat.astype(jnp.bfloat16), w2_mat.astype(jnp.bfloat16)


def reference_forward(x_nchw, conv1_w, bn1, conv2_w, bn2, eps=1e-5):
    """Pure-JAX reference matching the PyTorch module (eval-mode BN)."""
    def bn(y, p):
        g, b, m, v = p
        return (y - m[None, :, None, None]) / jnp.sqrt(v[None, :, None, None] + eps) \
            * g[None, :, None, None] + b[None, :, None, None]

    def lrelu(y):
        return jnp.where(y > 0, y, 0.1 * y)

    dn = ("NCHW", "OIHW", "NCHW")
    y = jax.lax.conv_general_dilated(x_nchw, conv1_w, (1, 1), "VALID",
                                     dimension_numbers=dn)
    y = lrelu(bn(y, bn1))
    y = jax.lax.conv_general_dilated(y, conv2_w, (1, 1), ((1, 1), (1, 1)),
                                     dimension_numbers=dn)
    y = lrelu(bn(y, bn2))
    return x_nchw + y


def _make_params(key, inplanes, planes, squeeze):
    Csq = max(1, inplanes // 2) if squeeze else inplanes
    ks = jax.random.split(key, 10)
    conv1_w = 0.3 * jax.random.normal(ks[0], (Csq, inplanes, 1, 1), jnp.float32)
    conv2_w = 0.1 * jax.random.normal(ks[1], (planes, Csq, 3, 3), jnp.float32)
    bn1 = (1.0 + 0.1 * jax.random.normal(ks[2], (Csq,), jnp.float32),
           0.1 * jax.random.normal(ks[3], (Csq,), jnp.float32),
           0.05 * jax.random.normal(ks[4], (Csq,), jnp.float32),
           1.0 + 0.1 * jax.random.uniform(ks[5], (Csq,)))
    bn2 = (1.0 + 0.1 * jax.random.normal(ks[6], (planes,), jnp.float32),
           0.1 * jax.random.normal(ks[7], (planes,), jnp.float32),
           0.05 * jax.random.normal(ks[8], (planes,), jnp.float32),
           1.0 + 0.1 * jax.random.uniform(ks[9], (planes,)))
    return conv1_w, bn1, conv2_w, bn2


if __name__ == "__main__":
    key = jax.random.PRNGKey(0)
    k_x1, k_p1, k_x2, k_p2 = jax.random.split(key, 4)

    # Case 1: ResBlock(4, 4, squeeze=False), 16x16 (H*W already lane-aligned),
    # fused-K im2col matmul path.  bf16 MXU -> tolerances sized for bf16.
    x1 = jax.random.normal(k_x1, (2, 4, 16, 16), jnp.float32)
    c1w_a, bn1_a, c2w_a, bn2_a = _make_params(k_p1, 4, 4, squeeze=False)
    w1m_a, w2m_a = prepare_resblock_params(c1w_a, bn1_a, c2w_a, bn2_a)
    out1 = resblock_pallas(x1, w1m_a, w2m_a)
    jax.block_until_ready(out1)
    ref1 = reference_forward(x1, c1w_a, bn1_a, c2w_a, bn2_a)
    err1 = float(jnp.max(jnp.abs(out1 - ref1)))
    assert jnp.allclose(out1, ref1, atol=3e-2, rtol=3e-2), err1

    # Case 2: ResBlock(4, 4, squeeze=True), 12x12 (H*W=144 padded to 256),
    # grouped-by-dh accumulating-matmul path forced on.
    x2 = jax.random.normal(k_x2, (1, 4, 12, 12), jnp.float32)
    c1w_b, bn1_b, c2w_b, bn2_b = _make_params(k_p2, 4, 4, squeeze=True)
    w1m_b, w2m_b = prepare_resblock_params(c1w_b, bn1_b, c2w_b, bn2_b)
    out2 = resblock_pallas(x2, w1m_b, w2m_b, group_taps_by_dh=True)
    jax.block_until_ready(out2)
    ref2 = reference_forward(x2, c1w_b, bn1_b, c2w_b, bn2_b)
    err2 = float(jnp.max(jnp.abs(out2 - ref2)))
    assert jnp.allclose(out2, ref2, atol=3e-2, rtol=3e-2), err2

    print("KERNEL_OK")
</pallas_src>

<mosaic_0001>
module attributes {stable_mosaic.version = 11 : i64} {
  func.func @_resblock_kernel(%arg0: i32, %arg1: memref<1x5x256xf32, #tpu.memory_space<vmem>>, %arg2: memref<16x5xbf16, #tpu.memory_space<vmem>>, %arg3: memref<4x144xbf16, #tpu.memory_space<vmem>>, %arg4: memref<8x256xf32, #tpu.memory_space<vmem>>, %arg5: memref<1x4x256xf32, #tpu.memory_space<vmem>>) attributes {dimension_semantics = [#tpu.dimension_semantics<parallel>], iteration_bounds = array<i64: 2>, scalar_prefetch = 0 : i64, scratch_operands = 0 : i64, tpu.core_type = #tpu.core_type<tc>, window_params = [{transform_indices = @transform_0, window_bounds = array<i64: 1, 5, 256>}, {pipeline_mode = #tpu.pipeline_mode<synchronous>, transform_indices = @transform_1, window_bounds = array<i64: 16, 5>}, {pipeline_mode = #tpu.pipeline_mode<synchronous>, transform_indices = @transform_2, window_bounds = array<i64: 4, 144>}, {pipeline_mode = #tpu.pipeline_mode<synchronous>, transform_indices = @transform_3, window_bounds = array<i64: 8, 256>}, {transform_indices = @transform_4, window_bounds = array<i64: 1, 4, 256>}]} {
    %c0 = arith.constant 0 : index
    %c0_0 = arith.constant 0 : index
    %c0_1 = arith.constant 0 : index
    %0 = vector.load %arg1[%c0, %c0_0, %c0_1] : memref<1x5x256xf32, #tpu.memory_space<vmem>>, vector<1x5x256xf32>
    %1 = vector.shape_cast %0 : vector<1x5x256xf32> to vector<5x256xf32>
    %2 = arith.truncf %1 : vector<5x256xf32> to vector<5x256xbf16>
    %c0_2 = arith.constant 0 : index
    %c0_3 = arith.constant 0 : index
    %3 = vector.load %arg2[%c0_2, %c0_3] : memref<16x5xbf16, #tpu.memory_space<vmem>>, vector<16x5xbf16>
    %cst = arith.constant dense<0.000000e+00> : vector<16x256xf32>
    %4 = tpu.matmul %3, %2, %cst {dimension_numbers = #tpu.dot_dimension_numbers<[1], [0], [0], [1], [0, 0, 1, 1], [], []>} : vector<16x5xbf16>, vector<5x256xbf16>, vector<16x256xf32> -> vector<16x256xf32>
    %cst_4 = arith.constant 1.000000e-01 : f32
    %5 = vector.broadcast %cst_4 : f32 to vector<16x256xf32>
    %6 = arith.mulf %5, %4 : vector<16x256xf32>
    %7 = arith.maximumf %4, %6 : vector<16x256xf32>
    %c17_i32 = arith.constant 17 : i32
    %8 = tpu.dynamic_rotate %7 by %c17_i32 dim 1 : vector<16x256xf32>, i32 -> vector<16x256xf32>
    %c0_5 = arith.constant 0 : index
    %c0_6 = arith.constant 0 : index
    %9 = vector.load %arg4[%c0_5, %c0_6] : memref<8x256xf32, #tpu.memory_space<vmem>>, vector<1x256xf32>
    %10 = vector.broadcast %9 : vector<1x256xf32> to vector<16x256xf32>
    %11 = arith.mulf %8, %10 : vector<16x256xf32>
    %12 = arith.truncf %11 : vector<16x256xf32> to vector<16x256xbf16>
    %c16_i32 = arith.constant 16 : i32
    %13 = tpu.dynamic_rotate %7 by %c16_i32 dim 1 : vector<16x256xf32>, i32 -> vector<16x256xf32>
    %c1 = arith.constant 1 : index
    %c0_7 = arith.constant 0 : index
    %14 = vector.load %arg4[%c1, %c0_7] : memref<8x256xf32, #tpu.memory_space<vmem>>, vector<1x256xf32>
    %15 = vector.broadcast %14 : vector<1x256xf32> to vector<16x256xf32>
    %16 = arith.mulf %13, %15 : vector<16x256xf32>
    %17 = arith.truncf %16 : vector<16x256xf32> to vector<16x256xbf16>
    %c15_i32 = arith.constant 15 : i32
    %18 = tpu.dynamic_rotate %7 by %c15_i32 dim 1 : vector<16x256xf32>, i32 -> vector<16x256xf32>
    %c2 = arith.constant 2 : index
    %c0_8 = arith.constant 0 : index
    %19 = vector.load %arg4[%c2, %c0_8] : memref<8x256xf32, #tpu.memory_space<vmem>>, vector<1x256xf32>
    %20 = vector.broadcast %19 : vector<1x256xf32> to vector<16x256xf32>
    %21 = arith.mulf %18, %20 : vector<16x256xf32>
    %22 = arith.truncf %21 : vector<16x256xf32> to vector<16x256xbf16>
    %c1_i32 = arith.constant 1 : i32
    %23 = tpu.dynamic_rotate %7 by %c1_i32 dim 1 : vector<16x256xf32>, i32 -> vector<16x256xf32>
    %c3 = arith.constant 3 : index
    %c0_9 = arith.constant 0 : index
    %24 = vector.load %arg4[%c3, %c0_9] : memref<8x256xf32, #tpu.memory_space<vmem>>, vector<1x256xf32>
    %25 = vector.broadcast %24 : vector<1x256xf32> to vector<16x256xf32>
    %26 = arith.mulf %23, %25 : vector<16x256xf32>
    %27 = arith.truncf %26 : vector<16x256xf32> to vector<16x256xbf16>
    %28 = arith.truncf %7 : vector<16x256xf32> to vector<16x256xbf16>
    %c255_i32 = arith.constant 255 : i32
    %29 = tpu.dynamic_rotate %7 by %c255_i32 dim 1 : vector<16x256xf32>, i32 -> vector<16x256xf32>
    %c4 = arith.constant 4 : index
    %c0_10 = arith.constant 0 : index
    %30 = vector.load %arg4[%c4, %c0_10] : memref<8x256xf32, #tpu.memory_space<vmem>>, vector<1x256xf32>
    %31 = vector.broadcast %30 : vector<1x256xf32> to vector<16x256xf32>
    %32 = arith.mulf %29, %31 : vector<16x256xf32>
    %33 = arith.truncf %32 : vector<16x256xf32> to vector<16x256xbf16>
    %c241_i32 = arith.constant 241 : i32
    %34 = tpu.dynamic_rotate %7 by %c241_i32 dim 1 : vector<16x256xf32>, i32 -> vector<16x256xf32>
    %c5 = arith.constant 5 : index
    %c0_11 = arith.constant 0 : index
    %35 = vector.load %arg4[%c5, %c0_11] : memref<8x256xf32, #tpu.memory_space<vmem>>, vector<1x256xf32>
    %36 = vector.broadcast %35 : vector<1x256xf32> to vector<16x256xf32>
    %37 = arith.mulf %34, %36 : vector<16x256xf32>
    %38 = arith.truncf %37 : vector<16x256xf32> to vector<16x256xbf16>
    %c240_i32 = arith.constant 240 : i32
    %39 = tpu.dynamic_rotate %7 by %c240_i32 dim 1 : vector<16x256xf32>, i32 -> vector<16x256xf32>
    %c6 = arith.constant 6 : index
    %c0_12 = arith.constant 0 : index
    %40 = vector.load %arg4[%c6, %c0_12] : memref<8x256xf32, #tpu.memory_space<vmem>>, vector<1x256xf32>
    %41 = vector.broadcast %40 : vector<1x256xf32> to vector<16x256xf32>
    %42 = arith.mulf %39, %41 : vector<16x256xf32>
    %43 = arith.truncf %42 : vector<16x256xf32> to vector<16x256xbf16>
    %c239_i32 = arith.constant 239 : i32
    %44 = tpu.dynamic_rotate %7 by %c239_i32 dim 1 : vector<16x256xf32>, i32 -> vector<16x256xf32>
    %c7 = arith.constant 7 : index
    %c0_13 = arith.constant 0 : index
    %45 = vector.load %arg4[%c7, %c0_13] : memref<8x256xf32, #tpu.memory_space<vmem>>, vector<1x256xf32>
    %46 = vector.broadcast %45 : vector<1x256xf32> to vector<16x256xf32>
    %47 = arith.mulf %44, %46 : vector<16x256xf32>
    %48 = arith.truncf %47 : vector<16x256xf32> to vector<16x256xbf16>
    %49 = tpu.concatenate %12, %17, %22, %27, %28, %33, %38, %43, %48 in 0 : vector<16x256xbf16>, vector<16x256xbf16>, vector<16x256xbf16>, vector<16x256xbf16>, vector<16x256xbf16>, vector<16x256xbf16>, vector<16x256xbf16>, vector<16x256xbf16>, vector<16x256xbf16> -> vector<144x256xbf16>
    %c0_14 = arith.constant 0 : index
    %c0_15 = arith.constant 0 : index
    %50 = vector.load %arg3[%c0_14, %c0_15] : memref<4x144xbf16, #tpu.memory_space<vmem>>, vector<4x144xbf16>
    %cst_16 = arith.constant dense<0.000000e+00> : vector<4x256xf32>
    %51 = tpu.matmul %50, %49, %cst_16 {dimension_numbers = #tpu.dot_dimension_numbers<[1], [0], [0], [1], [0, 0, 1, 1], [], []>} : vector<4x144xbf16>, vector<144x256xbf16>, vector<4x256xf32> -> vector<4x256xf32>
    %cst_17 = arith.constant 1.000000e-01 : f32
    %52 = vector.broadcast %cst_17 : f32 to vector<4x256xf32>
    %53 = arith.mulf %52, %51 : vector<4x256xf32>
    %54 = arith.maximumf %51, %53 : vector<4x256xf32>
    %c0_18 = arith.constant 0 : index
    %c0_19 = arith.constant 0 : index
    %c0_20 = arith.constant 0 : index
    %55 = vector.load %arg1[%c0_18, %c0_19, %c0_20] : memref<1x5x256xf32, #tpu.memory_space<vmem>>, vector<1x4x256xf32>
    %56 = vector.shape_cast %55 : vector<1x4x256xf32> to vector<4x256xf32>
    %57 = arith.addf %56, %54 : vector<4x256xf32>
    %c0_21 = arith.constant 0 : index
    %c0_22 = arith.constant 0 : index
    %c0_23 = arith.constant 0 : index
    %58 = vector.load %arg5[%c0_21, %c0_22, %c0_23] : memref<1x4x256xf32, #tpu.memory_space<vmem>>, vector<1x4x256xf32>
    %59 = vector.shape_cast %58 : vector<1x4x256xf32> to vector<4x256xf32>
    %60 = vector.shape_cast %57 : vector<4x256xf32> to vector<1x4x256xf32>
    tpu.vector_store %arg5[%c0_21, %c0_22, %c0_23], %60 {strides = array<i32>} : memref<1x4x256xf32, #tpu.memory_space<vmem>>, vector<1x4x256xf32>,
    return
  }
  func.func @transform_0(%arg0: i32) -> (i32, i32, i32) {
    %c0_i32 = arith.constant 0 : i32
    %c0_i32_0 = arith.constant 0 : i32
    %c0_i32_1 = arith.constant 0 : i32
    return %arg0, %c0_i32, %c0_i32_0 : i32, i32, i32
  }
  func.func @transform_1(%arg0: i32) -> (i32, i32) {
    %c0_i32 = arith.constant 0 : i32
    %c0_i32_0 = arith.constant 0 : i32
    %c0_i32_1 = arith.constant 0 : i32
    return %c0_i32, %c0_i32_0 : i32, i32
  }
  func.func @transform_2(%arg0: i32) -> (i32, i32) {
    %c0_i32 = arith.constant 0 : i32
    %c0_i32_0 = arith.constant 0 : i32
    %c0_i32_1 = arith.constant 0 : i32
    return %c0_i32, %c0_i32_0 : i32, i32
  }
  func.func @transform_3(%arg0: i32) -> (i32, i32) {
    %c0_i32 = arith.constant 0 : i32
    %c0_i32_0 = arith.constant 0 : i32
    %c0_i32_1 = arith.constant 0 : i32
    return %c0_i32, %c0_i32_0 : i32, i32
  }
  func.func @transform_4(%arg0: i32) -> (i32, i32, i32) {
    %c0_i32 = arith.constant 0 : i32
    %c0_i32_0 = arith.constant 0 : i32
    %c0_i32_1 = arith.constant 0 : i32
    return %arg0, %c0_i32, %c0_i32_0 : i32, i32, i32
  }
}

</mosaic_0001>

<llo_original>
// kernel: tpu_custom_call.1
$region0: #{tpu_custom_call.1}
  #allocation0 [shape = 'u32[]', space=smem, size = 0x4, offset = 0x4, fixed_abs, tag = 'smem constant byte address 0x4 - core index']
  #allocation1 [shape = 'u32[72,128]{1,0:T(1,128)}', space=vmem, size = 0x9000, scoped, tag = 'internal scratch']
  %s0 = inlined_call_operand.vmem [shape: f32[2,5,256], index: 0, kind: input, shape index: {}]
  %s1 = inlined_call_operand.vmem [shape: bf16[16,5], index: 1, kind: input, shape index: {}]
  %s2 = inlined_call_operand.vmem [shape: bf16[4,144], index: 2, kind: input, shape index: {}]
  %s3 = inlined_call_operand.vmem [shape: f32[8,256], index: 3, kind: input, shape index: {}]
  %s4 = inlined_call_operand.hbm [shape: f32[2,4,256], index: 4, kind: output, shape index: {}]
  %s5 = sld [smem:[#allocation0]]
  $region49: #{tpu_custom_call.1} parent=0
    _
  %s7 = ssub.s32 1, %s5
  %s8 = scalar_select 0, %s7, %s5
  $region1: #{tpu_custom_call.1} parent=0
    #allocation2 [shape = 'u8[8192]{0}', space=vmem, size = 0x2000, scoped, tag = 'output window, operand 0']
    #allocation3 [shape = 's32[2]{0}', space=sflag, size = 0x8, scoped, tag = 'scoped memory for tpu_custom_call.1']
    %9 = vsyncpa [#allocation3], 0
    %s10 = scalar_lea.sflag [#allocation3], 1
    %11 = vsyncpa %s10, 0
    loop: start=0, step=1, limit=4
    $region2: #{tpu_custom_call.1} parent=1 // loop_pre_header
      _
    $region3: #{tpu_custom_call.1} parent=1 // loop_header
      %s13 = sphi 0, %s17
      %p14 = scmp.ge.s32.totalorder %s13, 4
      %s23 = sphi 0, %s25
      %s26 = sphi 0, %s23
      %s27 = sphi 0, %s26
      %s43 = sphi 0, %s27
      %s47 = sphi 0, %s47
      %s49 = sphi 0, %s47
      %s50 = sphi 0, %s49
      %s64 = sphi 0, %s50
      %s68 = sphi 0, %s68
      %s70 = sphi 0, %s68
      %s71 = sphi 0, %s70
      %s85 = sphi 0, %s71
      %s89 = sphi 0, %s89
      %s91 = sphi 0, %s89
      %s92 = sphi 0, %s91
      %s106 = sphi 0, %s92
      %s112 = sphi 0, %s114
      %s115 = sphi 0, %s112
      %s116 = sphi 0, %s115
      %s132 = sphi 0, %s116
    $region4: #{tpu_custom_call.1} parent=1 // loop_header_branch
      %16 = sbr.rel (%p14) target = $region8
    $region5: #{tpu_custom_call.1} parent=1 // loop_body
      %s18 = ssub.s32 %s13, 1
      %s19 = ssub.s32 %s13, 2
      %s20 = sadd.s32 %s13, 1
      %s21 = ssub.s32 %s13, %s20
      %p22 = scmp.eq.s32.totalorder %s21, 0
      %s24 = sadd.s32 %s23, 1
      %s25 = scalar_select %p22, %s23, %s24
      %p28 = pneg %p22
      %p29 = scmp.eq.s32.totalorder %s13, 1
      %p30 = por %p28, %p29
      %p31 = scmp.ne.s32.totalorder %s23, %s26
      %p32 = scmp.eq.s32.totalorder %s13, 0
      %p33 = por %p31, %p32
      %p34 = scmp.ne.s32.totalorder %s23, %s26
      %p35 = scmp.eq.s32.totalorder %s18, 1
      %p36 = por %p34, %p35
      %p37 = scmp.ne.s32.totalorder %s26, %s27
      %p38 = scmp.eq.s32.totalorder %s18, 0
      %p39 = por %p37, %p38
      %p40 = scmp.ne.s32.totalorder %s26, %s27
      %p41 = scmp.eq.s32.totalorder %s19, 1
      %p42 = por %p40, %p41
      %p44 = scmp.ne.s32.totalorder %s27, %s43
      %p45 = scmp.eq.s32.totalorder %s19, 0
      %p46 = por %p44, %p45
      %s48 = sadd.s32 %s47, 1
      %p51 = scmp.eq.s32.totalorder %s13, 1
      %p52 = scmp.ne.s32.totalorder %s47, %s49
      %p53 = scmp.eq.s32.totalorder %s13, 0
      %p54 = por %p52, %p53
      %p55 = scmp.ne.s32.totalorder %s47, %s49
      %p56 = scmp.eq.s32.totalorder %s18, 1
      %p57 = por %p55, %p56
      %p58 = scmp.ne.s32.totalorder %s49, %s50
      %p59 = scmp.eq.s32.totalorder %s18, 0
      %p60 = por %p58, %p59
      %p61 = scmp.ne.s32.totalorder %s49, %s50
      %p62 = scmp.eq.s32.totalorder %s19, 1
      %p63 = por %p61, %p62
      %p65 = scmp.ne.s32.totalorder %s50, %s64
      %p66 = scmp.eq.s32.totalorder %s19, 0
      %p67 = por %p65, %p66
      %s69 = sadd.s32 %s68, 1
      %p72 = scmp.eq.s32.totalorder %s13, 1
      %p73 = scmp.ne.s32.totalorder %s68, %s70
      %p74 = scmp.eq.s32.totalorder %s13, 0
      %p75 = por %p73, %p74
      %p76 = scmp.ne.s32.totalorder %s68, %s70
      %p77 = scmp.eq.s32.totalorder %s18, 1
      %p78 = por %p76, %p77
      %p79 = scmp.ne.s32.totalorder %s70, %s71
      %p80 = scmp.eq.s32.totalorder %s18, 0
      %p81 = por %p79, %p80
      %p82 = scmp.ne.s32.totalorder %s70, %s71
      %p83 = scmp.eq.s32.totalorder %s19, 1
      %p84 = por %p82, %p83
      %p86 = scmp.ne.s32.totalorder %s71, %s85
      %p87 = scmp.eq.s32.totalorder %s19, 0
      %p88 = por %p86, %p87
      %s90 = sadd.s32 %s89, 1
      %p93 = scmp.eq.s32.totalorder %s13, 1
      %p94 = scmp.ne.s32.totalorder %s89, %s91
      %p95 = scmp.eq.s32.totalorder %s13, 0
      %p96 = por %p94, %p95
      %p97 = scmp.ne.s32.totalorder %s89, %s91
      %p98 = scmp.eq.s32.totalorder %s18, 1
      %p99 = por %p97, %p98
      %p100 = scmp.ne.s32.totalorder %s91, %s92
      %p101 = scmp.eq.s32.totalorder %s18, 0
      %p102 = por %p100, %p101
      %p103 = scmp.ne.s32.totalorder %s91, %s92
      %p104 = scmp.eq.s32.totalorder %s19, 1
      %p105 = por %p103, %p104
      %p107 = scmp.ne.s32.totalorder %s92, %s106
      %p108 = scmp.eq.s32.totalorder %s19, 0
      %p109 = por %p107, %p108
      %s110 = ssub.s32 %s13, %s20
      %p111 = scmp.eq.s32.totalorder %s110, 0
      %s113 = sadd.s32 %s112, 1
      %s114 = scalar_select %p111, %s112, %s113
      %p117 = pneg %p111
      %p118 = scmp.eq.s32.totalorder %s13, 1
      %p119 = por %p117, %p118
      %p120 = scmp.ne.s32.totalorder %s112, %s115
      %p121 = scmp.eq.s32.totalorder %s13, 0
      %p122 = por %p120, %p121
      %p123 = scmp.ne.s32.totalorder %s112, %s115
      %p124 = scmp.eq.s32.totalorder %s18, 1
      %p125 = por %p123, %p124
      %p126 = scmp.ne.s32.totalorder %s115, %s116
      %p127 = scmp.eq.s32.totalorder %s18, 0
      %p128 = por %p126, %p127
      %p129 = scmp.ne.s32.totalorder %s115, %s116
      %p130 = scmp.eq.s32.totalorder %s19, 1
      %p131 = por %p129, %p130
      %p133 = scmp.ne.s32.totalorder %s116, %s132
      %p134 = scmp.eq.s32.totalorder %s19, 0
      %p135 = por %p133, %p134
      %p136 = scmp.le.s32.totalorder 1, %s13
      %p137 = scmp.lt.s32.totalorder %s13, 3
      %p138 = pnand %p136, %p137
      %p139 = pneg %p138
      // Predicated region
      $region9: #{tpu_custom_call.1} parent=5 // pred_check
        _
      $region10: #{tpu_custom_call.1} parent=5 // pred_check_branch
        %141 = sbr.rel (%p138) target = $region12
      $region11: #{tpu_custom_call.1} parent=5 // pred_region
        %s142 = ssub.s32 %s13, 1
        // Predicated region
        $region13: #{tpu_custom_call.1} parent=11 // pred_check
          %p143 = pneg %p60
        $region14: #{tpu_custom_call.1} parent=11 // pred_check_branch
          %145 = sbr.rel (%p143) target = $region16
        $region15: #{tpu_custom_call.1} parent=11 // pred_region
          _
        $region16: #{tpu_custom_call.1} parent=11 // pred_fallthru
          _
        // Predicated region
        $region17: #{tpu_custom_call.1} parent=11 // pred_check
          %p146 = pneg %p81
        $region18: #{tpu_custom_call.1} parent=11 // pred_check_branch
          %148 = sbr.rel (%p146) target = $region20
        $region19: #{tpu_custom_call.1} parent=11 // pred_region
          _
        $region20: #{tpu_custom_call.1} parent=11 // pred_fallthru
          _
        // Predicated region
        $region21: #{tpu_custom_call.1} parent=11 // pred_check
          %p149 = pneg %p102
        $region22: #{tpu_custom_call.1} parent=11 // pred_check_branch
          %151 = sbr.rel (%p149) target = $region24
        $region23: #{tpu_custom_call.1} parent=11 // pred_region
          _
        $region24: #{tpu_custom_call.1} parent=11 // pred_fallthru
          _
      $region12: #{tpu_custom_call.1} parent=5 // pred_fallthru
        _
      %p152 = scmp.lt.s32.totalorder %s13, 2
      // Predicated region
      $region25: #{tpu_custom_call.1} parent=5 // pred_check
        %p153 = pneg %p152
      $region26: #{tpu_custom_call.1} parent=5 // pred_check_branch
        %155 = sbr.rel (%p153) target = $region28
      $region27: #{tpu_custom_call.1} parent=5 // pred_region
        // Predicated region
        $region29: #{tpu_custom_call.1} parent=27 // pred_check
          %p156 = pneg %p33
        $region30: #{tpu_custom_call.1} parent=27 // pred_check_branch
          %158 = sbr.rel (%p156) target = $region32
        $region31: #{tpu_custom_call.1} parent=27 // pred_region
          %p159 = scmp.lt.s32.totalorder %s13, 1
          %s160 = scalar_select %p159, %s13, 1
          %s161 = smul.addr %s160, 2
          %s162 = smul.addr %s161, 8
          %s163 = scalar_lea.vmem %s0, %s162
        $region32: #{tpu_custom_call.1} parent=27 // pred_fallthru
          _
      $region28: #{tpu_custom_call.1} parent=5 // pred_fallthru
        _
      %p164 = scmp.le.s32.totalorder 1, %s13
      %p165 = scmp.lt.s32.totalorder %s13, 3
      %p166 = pnand %p164, %p165
      %p167 = pneg %p166
      // Predicated region
      $region33: #{tpu_custom_call.1} parent=5 // pred_check
        _
      $region34: #{tpu_custom_call.1} parent=5 // pred_check_branch
        %169 = sbr.rel (%p166) target = $region36
      $region35: #{tpu_custom_call.1} parent=5 // pred_region
        %s170 = ssub.s32 %s13, 1
        %p171 = scmp.lt.s32.totalorder %s18, 1
        %s172 = scalar_select %p171, %s18, 1
        %s173 = smul.addr %s172, 2
        %s174 = smul.addr %s173, 8
        %s175 = scalar_lea.vmem %s0, %s174
        %p176 = pneg %p39
        %p177 = pneg %p36
        %p178 = pneg %p60
        %p179 = pneg %p57
        %p180 = pneg %p81
        %p181 = pneg %p78
        %p182 = pneg %p102
        %p183 = pneg %p99
        %p184 = pneg %p128
        %p185 = pneg %p125
        %s186 = sand.u32 %s115, 1
        %s187 = scalar_lea.sflag [#allocation3], %s186
        %s188 = sand.u32 %s115, 1
        %s189 = smul.addr %s188, 8
        %s190 = scalar_lea.vmem [#allocation2], %s189
        %p191 = scmp.lt.s32.totalorder %s18, 1
        %s192 = scalar_select %p191, %s18, 1
        %s193 = smul.addr %s192, 2
        %s194 = smul.addr %s193, 8
        %s195 = scalar_lea.vmem %s0, %s194
        %v197 = vld [vmem:[%s195] sm:$0x1f]
        %v198 = vld [vmem:[%s195 + $0x8] sm:$0x1f]
        %v199 = vpack.c.bf16 %v197, %v197
        %v200 = vpack.c.bf16 %v198, %v198
        %v201 = vld [vmem:[%s1] sm:$0xf]
        %v202 = vld [vmem:[%s1 + $0x4] sm:$0xf]
        %v205 = vunpack.c.l.b16 %v201
        %v206 = vunpack.c.l.b16 %v202
        %v207 = vpack.c.b16 %v206, %v205
        %vm208 = vcmask 39936
        %v210 = vsel %vm208, %v207, 0
        %vm212 = vcmask 1041408
        %vm213 = vcmask 1042432
        %v214 = vsel %vm212, 4294967295, 65535
        %v215 = vsel %vm213, %v214, 0
        %v217 = vand.u32 %v199, %v215
        %v220 = vand.u32 %v200, %v215
        %222 = vmatpush.bf16.msra.mxu0 0
        %223 = vmatpush.bf16.msra.mxu0 0
        %224 = vmatpush.bf16.msra.mxu0 0
        %225 = vmatpush.bf16.msra.mxu0 0
        %226 = vmatpush.bf16.msra.mxu0 0
        %227 = vmatpush.bf16.msra.mxu0 0
        %228 = vmatpush.bf16.msra.mxu0 0
        %229 = vmatpush.bf16.msra.mxu0 %v217
        %230 = vmatmul.bf16.gmra.mxu0 %v210
        %v231 = vpop.f32.mrf.mxu0
        %v232 = vadd.f32 0.0, %v231
        %v233 = vpop.f32.mrf.mxu0
        %v234 = vadd.f32 0.0, %v233
        %235 = vdwg.mxu0
        %236 = vmatpush.bf16.msra.mxu0 0
        %237 = vmatpush.bf16.msra.mxu0 0
        %238 = vmatpush.bf16.msra.mxu0 0
        %239 = vmatpush.bf16.msra.mxu0 0
        %240 = vmatpush.bf16.msra.mxu0 0
        %241 = vmatpush.bf16.msra.mxu0 0
        %242 = vmatpush.bf16.msra.mxu0 0
        %243 = vmatpush.bf16.msra.mxu0 %v220
        %244 = vmatmul.bf16.gmra.mxu0 %v210
        %v245 = vpop.f32.mrf.mxu0
        %v246 = vadd.f32 0.0, %v245
        %v247 = vpop.f32.mrf.mxu0
        %v248 = vadd.f32 0.0, %v247
        %249 = vdwg.mxu0
        %v250 = vmul.f32 %v232, 0.1
        %v251 = vmul.f32 %v246, 0.1
        %v252 = vmul.f32 %v234, 0.1
        %v253 = vmul.f32 %v248, 0.1
        %v254 = vmax.f32 %v232, %v250
        %v255 = vmax.f32 %v246, %v251
        %v256 = vmax.f32 %v234, %v252
        %v257 = vmax.f32 %v248, %v253
        %258 = vrot.lane.b32.xlu0 %v254, 17
        %v259 = vpop.permute.xlu0 %258
        %260 = vrot.lane.b32.xlu0 %v256, 17
        %v261 = vpop.permute.xlu0 %260
        %262 = vrot.lane.b32.xlu0 %v255, 17
        %v263 = vpop.permute.xlu0 %262
        %264 = vrot.lane.b32.xlu0 %v257, 17
        %v265 = vpop.permute.xlu0 %264
        %v266 = vlaneseq
        %v267 = vand.u32 %v266, 127
        %vm268 = vcmp.lt.s32.totalorder %v267, 17
        %v269 = vsel %vm268, %v259, %v263
        %v270 = vsel %vm268, %v261, %v265
        %v271 = vsel %vm268, %v263, %v259
        %v272 = vsel %vm268, %v265, %v261
        %v273 = vld [vmem:[%s3] ss:$8 sm:$0x3]
        %v275 = vperm.slane %v273, 0
        %v276 = vperm.slane %v273, 1
        %v279 = vmul.f32 %v271, %v275
        %v280 = vmul.f32 %v269, %v276
        %v281 = vmul.f32 %v272, %v275
        %v282 = vmul.f32 %v270, %v276
        %v283 = vpack.c.bf16 %v280, %v279
        %v284 = vpack.c.bf16 %v282, %v281
        %285 = vrot.lane.b32.xlu0 %v254, 16
        %v286 = vpop.permute.xlu0 %285
        %287 = vrot.lane.b32.xlu0 %v256, 16
        %v288 = vpop.permute.xlu0 %287
        %289 = vrot.lane.b32.xlu0 %v255, 16
        %v290 = vpop.permute.xlu0 %289
        %291 = vrot.lane.b32.xlu0 %v257, 16
        %v292 = vpop.permute.xlu0 %291
        %vm293 = vcmp.lt.s32.totalorder %v267, 16
        %v294 = vsel %vm293, %v286, %v290
        %v295 = vsel %vm293, %v288, %v292
        %v296 = vsel %vm293, %v290, %v286
        %v297 = vsel %vm293, %v292, %v288
        %s298 = scalar_lea.vmem %s3, 1
        %v299 = vld [vmem:[%s298] ss:$8 sm:$0x3]
        %v301 = vperm.slane %v299, 0
        %v302 = vperm.slane %v299, 1
        %v305 = vmul.f32 %v296, %v301
        %v306 = vmul.f32 %v294, %v302
        %v307 = vmul.f32 %v297, %v301
        %v308 = vmul.f32 %v295, %v302
        %v309 = vpack.c.bf16 %v306, %v305
        %v310 = vpack.c.bf16 %v308, %v307
        %311 = vrot.lane.b32.xlu0 %v254, 15
        %v312 = vpop.permute.xlu0 %311
        %313 = vrot.lane.b32.xlu0 %v256, 15
        %v314 = vpop.permute.xlu0 %313
        %315 = vrot.lane.b32.xlu0 %v255, 15
        %v316 = vpop.permute.xlu0 %315
        %317 = vrot.lane.b32.xlu0 %v257, 15
        %v318 = vpop.permute.xlu0 %317
        %vm319 = vcmp.lt.s32.totalorder %v267, 15
        %v320 = vsel %vm319, %v312, %v316
        %v321 = vsel %vm319, %v314, %v318
        %v322 = vsel %vm319, %v316, %v312
        %v323 = vsel %vm319, %v318, %v314
        %s324 = scalar_lea.vmem %s3, 2
        %v325 = vld [vmem:[%s324] ss:$8 sm:$0x3]
        %v327 = vperm.slane %v325, 0
        %v328 = vperm.slane %v325, 1
        %v331 = vmul.f32 %v322, %v327
        %v332 = vmul.f32 %v320, %v328
        %v333 = vmul.f32 %v323, %v327
        %v334 = vmul.f32 %v321, %v328
        %v335 = vpack.c.bf16 %v332, %v331
        %v336 = vpack.c.bf16 %v334, %v333
        %337 = vrot.lane.b32.xlu0 %v254, 1
        %v338 = vpop.permute.xlu0 %337
        %339 = vrot.lane.b32.xlu0 %v256, 1
        %v340 = vpop.permute.xlu0 %339
        %341 = vrot.lane.b32.xlu0 %v255, 1
        %v342 = vpop.permute.xlu0 %341
        %343 = vrot.lane.b32.xlu0 %v257, 1
        %v344 = vpop.permute.xlu0 %343
        %vm345 = vcmp.lt.s32.totalorder %v267, 1
        %v346 = vsel %vm345, %v338, %v342
        %v347 = vsel %vm345, %v340, %v344
        %v348 = vsel %vm345, %v342, %v338
        %v349 = vsel %vm345, %v344, %v340
        %s350 = scalar_lea.vmem %s3, 3
        %v351 = vld [vmem:[%s350] ss:$8 sm:$0x3]
        %v353 = vperm.slane %v351, 0
        %v354 = vperm.slane %v351, 1
        %v357 = vmul.f32 %v348, %v353
        %v358 = vmul.f32 %v346, %v354
        %v359 = vmul.f32 %v349, %v353
        %v360 = vmul.f32 %v347, %v354
        %v361 = vpack.c.bf16 %v358, %v357
        %v362 = vpack.c.bf16 %v360, %v359
        %v363 = vpack.c.bf16 %v255, %v254
        %v364 = vpack.c.bf16 %v257, %v256
        %365 = vrot.lane.b32.xlu0 %v254, 127
        %v366 = vpop.permute.xlu0 %365
        %367 = vrot.lane.b32.xlu0 %v256, 127
        %v368 = vpop.permute.xlu0 %367
        %369 = vrot.lane.b32.xlu0 %v255, 127
        %v370 = vpop.permute.xlu0 %369
        %371 = vrot.lane.b32.xlu0 %v257, 127
        %v372 = vpop.permute.xlu0 %371
        %vm373 = vcmp.lt.s32.totalorder %v267, 127
        %v374 = vsel %vm373, %v366, %v370
        %v375 = vsel %vm373, %v368, %v372
        %v376 = vsel %vm373, %v370, %v366
        %v377 = vsel %vm373, %v372, %v368
        %s378 = scalar_lea.vmem %s3, 4
        %v379 = vld [vmem:[%s378] ss:$8 sm:$0x3]
        %v381 = vperm.slane %v379, 0
        %v382 = vperm.slane %v379, 1
        %v385 = vmul.f32 %v374, %v381
        %v386 = vmul.f32 %v376, %v382
        %v387 = vmul.f32 %v375, %v381
        %v388 = vmul.f32 %v377, %v382
        %v389 = vpack.c.bf16 %v386, %v385
        %v390 = vpack.c.bf16 %v388, %v387
        %391 = vrot.lane.b32.xlu0 %v254, 113
        %v392 = vpop.permute.xlu0 %391
        %393 = vrot.lane.b32.xlu0 %v256, 113
        %v394 = vpop.permute.xlu0 %393
        %395 = vrot.lane.b32.xlu0 %v255, 113
        %v396 = vpop.permute.xlu0 %395
        %397 = vrot.lane.b32.xlu0 %v257, 113
        %v398 = vpop.permute.xlu0 %397
        %vm399 = vcmp.lt.s32.totalorder %v267, 113
        %v400 = vsel %vm399, %v392, %v396
        %v401 = vsel %vm399, %v394, %v398
        %v402 = vsel %vm399, %v396, %v392
        %v403 = vsel %vm399, %v398, %v394
        %s404 = scalar_lea.vmem %s3, 5
        %v405 = vld [vmem:[%s404] ss:$8 sm:$0x3]
        %v407 = vperm.slane %v405, 0
        %v408 = vperm.slane %v405, 1
        %v411 = vmul.f32 %v400, %v407
        %v412 = vmul.f32 %v402, %v408
        %v413 = vmul.f32 %v401, %v407
        %v414 = vmul.f32 %v403, %v408
        %v415 = vpack.c.bf16 %v412, %v411
        %v416 = vpack.c.bf16 %v414, %v413
        %417 = vrot.lane.b32.xlu0 %v254, 112
        %v418 = vpop.permute.xlu0 %417
        %419 = vrot.lane.b32.xlu0 %v256, 112
        %v420 = vpop.permute.xlu0 %419
        %421 = vrot.lane.b32.xlu0 %v255, 112
        %v422 = vpop.permute.xlu0 %421
        %423 = vrot.lane.b32.xlu0 %v257, 112
        %v424 = vpop.permute.xlu0 %423
        %vm425 = vcmp.lt.s32.totalorder %v267, 112
        %v426 = vsel %vm425, %v418, %v422
        %v427 = vsel %vm425, %v420, %v424
        %v428 = vsel %vm425, %v422, %v418
        %v429 = vsel %vm425, %v424, %v420
        %s430 = scalar_lea.vmem %s3, 6
        %v431 = vld [vmem:[%s430] ss:$8 sm:$0x3]
        %v433 = vperm.slane %v431, 0
        %v434 = vperm.slane %v431, 1
        %v437 = vmul.f32 %v426, %v433
        %v438 = vmul.f32 %v428, %v434
        %v439 = vmul.f32 %v427, %v433
        %v440 = vmul.f32 %v429, %v434
        %v441 = vpack.c.bf16 %v438, %v437
        %v442 = vpack.c.bf16 %v440, %v439
        %443 = vrot.lane.b32.xlu0 %v254, 111
        %v444 = vpop.permute.xlu0 %443
        %445 = vrot.lane.b32.xlu0 %v256, 111
        %v446 = vpop.permute.xlu0 %445
        %447 = vrot.lane.b32.xlu0 %v255, 111
        %v448 = vpop.permute.xlu0 %447
        %449 = vrot.lane.b32.xlu0 %v257, 111
        %v450 = vpop.permute.xlu0 %449
        %vm451 = vcmp.lt.s32.totalorder %v267, 111
        %v452 = vsel %vm451, %v444, %v448
        %v453 = vsel %vm451, %v446, %v450
        %v454 = vsel %vm451, %v448, %v444
        %v455 = vsel %vm451, %v450, %v446
        %s456 = scalar_lea.vmem %s3, 7
        %v457 = vld [vmem:[%s456] ss:$8 sm:$0x3]
        %v459 = vperm.slane %v457, 0
        %v460 = vperm.slane %v457, 1
        %v463 = vmul.f32 %v452, %v459
        %v464 = vmul.f32 %v454, %v460
        %v465 = vmul.f32 %v453, %v459
        %v466 = vmul.f32 %v455, %v460
        %v467 = vpack.c.bf16 %v464, %v463
        %v468 = vpack.c.bf16 %v466, %v465
        %v471 = vunpack.c.l.b16 %v283
        %v472 = vunpack.c.h.b16 %v283
        %v473 = vunpack.c.l.b16 %v284
        %v474 = vunpack.c.h.b16 %v284
        %v475 = vpack.c.b16 %v473, %v471
        %v476 = vpack.c.b16 %v474, %v472
        %v481 = vunpack.c.l.b16 %v309
        %v482 = vunpack.c.h.b16 %v309
        %v483 = vunpack.c.l.b16 %v310
        %v484 = vunpack.c.h.b16 %v310
        %v485 = vpack.c.b16 %v483, %v481
        %v486 = vpack.c.b16 %v484, %v482
        %v491 = vunpack.c.l.b16 %v335
        %v492 = vunpack.c.h.b16 %v335
        %v493 = vunpack.c.l.b16 %v336
        %v494 = vunpack.c.h.b16 %v336
        %v495 = vpack.c.b16 %v493, %v491
        %v496 = vpack.c.b16 %v494, %v492
        %v501 = vunpack.c.l.b16 %v361
        %v502 = vunpack.c.h.b16 %v361
        %v503 = vunpack.c.l.b16 %v362
        %v504 = vunpack.c.h.b16 %v362
        %v505 = vpack.c.b16 %v503, %v501
        %v506 = vpack.c.b16 %v504, %v502
        %v511 = vunpack.c.l.b16 %v363
        %v512 = vunpack.c.h.b16 %v363
        %v513 = vunpack.c.l.b16 %v364
        %v514 = vunpack.c.h.b16 %v364
        %v515 = vpack.c.b16 %v513, %v511
        %v516 = vpack.c.b16 %v514, %v512
        %v521 = vunpack.c.l.b16 %v389
        %v522 = vunpack.c.h.b16 %v389
        %v523 = vunpack.c.l.b16 %v390
        %v524 = vunpack.c.h.b16 %v390
        %v525 = vpack.c.b16 %v523, %v521
        %v526 = vpack.c.b16 %v524, %v522
        %v531 = vunpack.c.l.b16 %v415
        %v532 = vunpack.c.h.b16 %v415
        %v533 = vunpack.c.l.b16 %v416
        %v534 = vunpack.c.h.b16 %v416
        %v535 = vpack.c.b16 %v533, %v531
        %v536 = vpack.c.b16 %v534, %v532
        %v541 = vunpack.c.l.b16 %v441
        %v542 = vunpack.c.h.b16 %v441
        %v543 = vunpack.c.l.b16 %v442
        %v544 = vunpack.c.h.b16 %v442
        %v545 = vpack.c.b16 %v543, %v541
        %v546 = vpack.c.b16 %v544, %v542
        %v551 = vunpack.c.l.b16 %v467
        %v552 = vunpack.c.h.b16 %v467
        %v553 = vunpack.c.l.b16 %v468
        %v554 = vunpack.c.h.b16 %v468
        %v555 = vpack.c.b16 %v553, %v551
        %v556 = vpack.c.b16 %v554, %v552
        %v559 = vld [vmem:[%s2] sm:$0xf]
        %561 = vst [vmem:[#allocation1] ss:$4 sm:$0xff] %v559
        %v562 = vld.sshfl [vmem:[#allocation1] sm:$0xff pattern:$0x73625140]
        %v563 = vld.sshfl [vmem:[#allocation1 + $0x8] sm:$0xff pattern:$0x73625140]
        %vm565 = vcmask 130048
        %v566 = vsel %vm565, %v563, 0
        %568 = vmatpush.bf16.msra.mxu0 %v545
        %569 = vmatpush.bf16.msra.mxu0 %v535
        %570 = vmatpush.bf16.msra.mxu0 %v525
        %571 = vmatpush.bf16.msra.mxu0 %v515
        %572 = vmatpush.bf16.msra.mxu0 %v505
        %573 = vmatpush.bf16.msra.mxu0 %v495
        %574 = vmatpush.bf16.msra.mxu0 %v485
        %575 = vmatpush.bf16.msra.mxu0 %v475
        %576 = vmatmul.bf16.gmra.mxu0 %v562
        %v577 = vpop.f32.mrf.mxu0
        %v578 = vadd.f32 0.0, %v577
        %v579 = vpop.f32.mrf.mxu0
        %580 = vdwg.mxu0
        %581 = vmatpush.bf16.msra.mxu0 0
        %582 = vmatpush.bf16.msra.mxu0 0
        %583 = vmatpush.bf16.msra.mxu0 0
        %584 = vmatpush.bf16.msra.mxu0 0
        %585 = vmatpush.bf16.msra.mxu0 0
        %586 = vmatpush.bf16.msra.mxu0 0
        %587 = vmatpush.bf16.msra.mxu0 0
        %588 = vmatpush.bf16.msra.mxu0 %v555
        %589 = vmatmul.bf16.gmra.mxu0 %v566
        %v590 = vpop.f32.mrf.mxu0
        %v591 = vadd.f32 %v578, %v590
        %v592 = vpop.f32.mrf.mxu0
        %593 = vdwg.mxu0
        %594 = vmatpush.bf16.msra.mxu0 %v546
        %595 = vmatpush.bf16.msra.mxu0 %v536
        %596 = vmatpush.bf16.msra.mxu0 %v526
        %597 = vmatpush.bf16.msra.mxu0 %v516
        %598 = vmatpush.bf16.msra.mxu0 %v506
        %599 = vmatpush.bf16.msra.mxu0 %v496
        %600 = vmatpush.bf16.msra.mxu0 %v486
        %601 = vmatpush.bf16.msra.mxu0 %v476
        %602 = vmatmul.bf16.gmra.mxu0 %v562
        %v603 = vpop.f32.mrf.mxu0
        %v604 = vadd.f32 0.0, %v603
        %v605 = vpop.f32.mrf.mxu0
        %606 = vdwg.mxu0
        %607 = vmatpush.bf16.msra.mxu0 0
        %608 = vmatpush.bf16.msra.mxu0 0
        %609 = vmatpush.bf16.msra.mxu0 0
        %610 = vmatpush.bf16.msra.mxu0 0
        %611 = vmatpush.bf16.msra.mxu0 0
        %612 = vmatpush.bf16.msra.mxu0 0
        %613 = vmatpush.bf16.msra.mxu0 0
        %614 = vmatpush.bf16.msra.mxu0 %v556
        %615 = vmatmul.bf16.gmra.mxu0 %v566
        %v616 = vpop.f32.mrf.mxu0
        %v617 = vadd.f32 %v604, %v616
        %v618 = vpop.f32.mrf.mxu0
        %619 = vdwg.mxu0
        %v620 = vmul.f32 %v591, 0.1
        %v621 = vmul.f32 %v617, 0.1
        %v622 = vmax.f32 %v591, %v620
        %v623 = vmax.f32 %v617, %v621
        %v624 = vld [vmem:[%s195] sm:$0xf]
        %v625 = vld [vmem:[%s195 + $0x8] sm:$0xf]
        %v626 = vadd.f32 %v624, %v622
        %v627 = vadd.f32 %v625, %v623
        %v630 = vrot.slane %v627, 4
        %vm631 = vcmask 1043456
        %v632 = vsel %vm631, %v626, %v630
        %634 = vst [vmem:[%s190] sm:$0xff] %v632
        %s635 = sand.u32 %s115, 1
        %s636 = scalar_lea.sflag [#allocation3], %s635
        %s637 = sand.u32 %s115, 1
        %s638 = smul.addr %s637, 8
        %s639 = scalar_lea.vmem [#allocation2], %s638
        // Predicated region
        $region37: #{tpu_custom_call.1} parent=35 // pred_check
          %p640 = pneg %p125
        $region38: #{tpu_custom_call.1} parent=35 // pred_check_branch
          %642 = sbr.rel (%p640) target = $region40
        $region39: #{tpu_custom_call.1} parent=35 // pred_region
          %644 = vsyncadd %s636, 0
          %s645 = smul.addr %s18, 2
          %s646 = smul.addr %s645, 4
          %s647 = scalar_lea.hbm %s4, %s646
          %s649 = sshll.u32 %s639, 4
          %s650 = int_to_ptr.vmem [resolvable:$true] %s649
          %s651 = sshll.u32 %s647, 4
          %s652 = int_to_ptr.hbm [resolvable:$true] %s651
          %654 = dma.vmem_to_hbm [thread:$0]  %s650, 128, %s652, %s636
        $region40: #{tpu_custom_call.1} parent=35 // pred_fallthru
          _
      $region36: #{tpu_custom_call.1} parent=5 // pred_fallthru
        _
      %p655 = scmp.le.s32.totalorder 2, %s13
      // Predicated region
      $region41: #{tpu_custom_call.1} parent=5 // pred_check
        %p656 = pneg %p655
      $region42: #{tpu_custom_call.1} parent=5 // pred_check_branch
        %658 = sbr.rel (%p656) target = $region44
      $region43: #{tpu_custom_call.1} parent=5 // pred_region
        %s659 = ssub.s32 %s13, 2
        // Predicated region
        $region45: #{tpu_custom_call.1} parent=43 // pred_check
          %p660 = pneg %p131
        $region46: #{tpu_custom_call.1} parent=43 // pred_check_branch
          %662 = sbr.rel (%p660) target = $region48
        $region47: #{tpu_custom_call.1} parent=43 // pred_region
          %s663 = sand.u32 %s116, 1
          %s664 = scalar_lea.sflag [#allocation3], %s663
          %s665 = sand.u32 %s116, 1
          %s666 = smul.addr %s665, 8
          %s667 = scalar_lea.vmem [#allocation2], %s666
          %669 = dma.done %s664, 128
        $region48: #{tpu_custom_call.1} parent=43 // pred_fallthru
          _
      $region44: #{tpu_custom_call.1} parent=5 // pred_fallthru
        _
    $region6: #{tpu_custom_call.1} parent=1 // loop_footer
      %s17 = sadd.s32 1, %s13
    $region7: #{tpu_custom_call.1} parent=1 // loop_footer_branch
      %12 = sbr.rel target = $region3
    $region8: #{tpu_custom_call.1} parent=1 // loop_exit
      _
    %670 = vsyncpa [#allocation3], 1
    %s671 = scalar_lea.sflag [#allocation3], 1
    %672 = vsyncpa %s671, 1

</llo_original>
